<compile_context>
chip_gen: v7x
topology: tpu7x:2x2x1
jax: 0.10.0
libtpu: 0.0.40
codegen_flags: <defaults>
</compile_context>

<pallas_src>
import math

import numpy as np
import jax
import jax.numpy as jnp
from jax import lax
from jax.experimental import pallas as pl
from jax.experimental.pallas import tpu as pltpu

_MiB = 1024 * 1024


def _gauss_taps(radius):
    """1-D truncated Gaussian taps (sigma = radius), python floats, sum = 1."""
    if radius <= 0:
        return (1.0,)
    K = 2 * radius + 1
    ax = np.arange(K, dtype=np.float64) - radius
    g = np.exp(-(ax ** 2) / (2.0 * float(radius) ** 2))
    g = (g / g.sum()).astype(np.float32)
    return tuple(float(v) for v in g)


def _vmem_capacity_bytes():
    try:
        return int(pltpu.get_tpu_info().vmem_capacity_bytes)
    except Exception:
        return 64 * _MiB      # conservative fallback (v7x per-TensorCore)


def _make_blur_kernel(H, W_seg, L, radius, taps):
    """Fused quantize -> separable edge-replicate blur -> requantize.

    Block in : (TB, H, L) in the input dtype, values in [0, 1].
    Block out: (TB, H, L), same dtype.
    The lane axis L holds L // W_seg independent image segments of width W_seg
    packed side by side (L == W_seg when no packing).
    hs_ref    : (TB, H + 2*radius, L) f32 VMEM scratch (vertical halo).
    """
    r = radius

    def kernel(x_ref, o_ref, hs_ref):
        x = x_ref[...].astype(jnp.float32)                   # (TB, H, L)
        # ToPILImage on a float tensor == mul(255).byte(): truncation.
        # Inputs are contractually in [0, 1], so no clip is needed here.
        xq = jnp.floor(x * 255.0)

        if r > 0:
            # --- horizontal 1xK pass: lane rotates + per-segment edge clamp.
            lane = lax.broadcasted_iota(jnp.int32, xq.shape, 2)
            off = lane % W_seg if L != W_seg else lane        # offset in segment
            h = taps[r] * xq
            left = xq                                         # -> x[clamp(o-d, 0)]
            right = xq                                        # -> x[clamp(o+d, W-1)]
            for d in range(1, r + 1):
                left = jnp.where(off < d, left, pltpu.roll(xq, d, axis=2))
                right = jnp.where(off >= W_seg - d, right,
                                  pltpu.roll(xq, L - d, axis=2))
                h = h + taps[r - d] * (left + right)          # symmetric taps

            # --- vertical Kx1 pass through a VMEM halo scratch (plain vld).
            hs_ref[:, r:r + H, :] = h
            for d in range(r):                                # replicate edges
                hs_ref[:, d:d + 1, :] = h[:, 0:1, :]
                hs_ref[:, H + r + d:H + r + d + 1, :] = h[:, H - 1:H, :]
            acc = taps[r] * h
            for d in range(1, r + 1):
                acc = acc + taps[r - d] * (hs_ref[:, r - d:r - d + H, :]
                                           + hs_ref[:, r + d:r + d + H, :])
        else:
            acc = xq

        # PIL stores the filtered result as uint8 (round half up); ToTensor
        # divides by 255.  acc >= 0 by construction -> only the upper clamp.
        out = jnp.floor(jnp.minimum(acc + 0.5, 255.0)) * (1.0 / 255.0)
        o_ref[...] = out.astype(o_ref.dtype)

    return kernel


def gaussian_blur_filter(x, kernelsize=2):
    """Forward pass of GaussianBlurFilter.

    x: (N, C, H, W) float array in [0, 1] (NCHW, as in PyTorch).
    Returns (N, C, H, W) in x.dtype (matches torch's `x.new_tensor(...)`).
    """
    N, C, H, W = x.shape
    r = int(kernelsize)
    taps = _gauss_taps(r)
    P = N * C

    xp = x.reshape(P, H, W)

    # Lane packing for small images: put g planes side by side on the lane
    # axis so the kernel works on a lane-dense (H, g*W) tile and the output
    # stores are unmasked.  Pure layout plumbing in the wrapper.
    g = math.gcd(P, 128 // W) if W < 128 else 1
    if g > 1:
        xp = (xp.reshape(P // g, g, H, W)
                .transpose(0, 2, 1, 3)
                .reshape(P // g, H, g * W))
    Pp, L = P // g, g * W

    # Per-generation VMEM budget (v7x: 64 MiB per TC; v5e/v6e: 128 MiB).
    vmem_cap = _vmem_capacity_bytes()
    vmem_limit = min(vmem_cap * 3 // 4, 96 * _MiB)
    budget = vmem_limit // 4          # double-buffering + halo/temps headroom

    # Planes per grid step: biggest divisor of Pp whose working set (double-
    # buffered in/out blocks, f32 halo scratch, live f32 temporaries) fits the
    # budget, capped at Pp // 2 so v7x's two TensorCores both get grid steps.
    # (A prime/awkward Pp falls back to TB = 1: correct, just more steps.)
    itemsize = x.dtype.itemsize
    per_tb_bytes = H * L * (4 * itemsize + 28)
    cap = min(Pp, max(1, budget // per_tb_bytes), max(1, Pp // 2))
    TB = 1
    for tb in range(cap, 0, -1):
        if Pp % tb == 0:
            TB = tb
            break
    num_steps = Pp // TB

    # Deepen input pipelining when there are enough steps to overlap (helps
    # the memory-bound v5e path; neutral elsewhere).
    in_spec_kwargs = {}
    if num_steps >= 3:
        in_spec_kwargs = dict(pipeline_mode=pl.Buffered(3))

    kernel = _make_blur_kernel(H, W, L, r, taps)

    out = pl.pallas_call(
        kernel,
        out_shape=jax.ShapeDtypeStruct((Pp, H, L), x.dtype),
        grid=(num_steps,),
        in_specs=[pl.BlockSpec((TB, H, L), lambda i: (i, 0, 0),
                               **in_spec_kwargs)],
        out_specs=pl.BlockSpec((TB, H, L), lambda i: (i, 0, 0)),
        scratch_shapes=[pltpu.VMEM((TB, H + 2 * r, L), jnp.float32)],
        compiler_params=pltpu.CompilerParams(
            dimension_semantics=("parallel",),
            vmem_limit_bytes=vmem_limit),
    )(xp)

    if g > 1:
        out = (out.reshape(Pp, H, g, W)
                  .transpose(0, 2, 1, 3)
                  .reshape(P, H, W))
    return out.reshape(N, C, H, W)


def _reference_blur(x, kernelsize=2):
    """Pure-JAX oracle (same math, unfused, unpacked) for correctness checks."""
    N, C, H, W = x.shape
    r = int(kernelsize)
    taps = _gauss_taps(r)
    K = 2 * r + 1
    xq = jnp.floor(jnp.clip(x.astype(jnp.float32) * 255.0, 0.0, 255.0))
    xpad = jnp.pad(xq, ((0, 0), (0, 0), (0, 0), (r, r)), mode="edge")
    h = taps[0] * xpad[..., 0:W]
    for s in range(1, K):
        h = h + taps[s] * xpad[..., s:s + W]
    hp = jnp.pad(h, ((0, 0), (0, 0), (r, r), (0, 0)), mode="edge")
    acc = taps[0] * hp[..., 0:H, :]
    for s in range(1, K):
        acc = acc + taps[s] * hp[..., s:s + H, :]
    return (jnp.floor(jnp.clip(acc + 0.5, 0.0, 255.0)) / 255.0).astype(x.dtype)


if __name__ == "__main__":
    key = jax.random.PRNGKey(0)
    # Small NCHW input: batch=2, channels=4, 16x16 spatial (N*C = 8 planes,
    # packed 8-wide on the lane axis -> one lane-dense (16, 128) tile).
    x = jax.random.uniform(key, (2, 4, 16, 16), dtype=jnp.float32)

    y = gaussian_blur_filter(x, kernelsize=2)
    y = jax.block_until_ready(y)

    assert y.shape == x.shape and y.dtype == x.dtype
    assert bool(jnp.all(jnp.isfinite(y)))

    # Compare against the pure-JAX oracle; allow <= 1 uint8 level of slack for
    # symmetric-tap reassociation right at a floor(+0.5) boundary.
    y_ref = _reference_blur(x, kernelsize=2)
    max_err = float(jnp.max(jnp.abs(y - y_ref)))
    assert max_err <= (1.0 / 255.0) + 1e-5, f"max_err={max_err}"

    print("KERNEL_OK")
</pallas_src>

<mosaic_0001>
module attributes {stable_mosaic.version = 11 : i64} {
  func.func @kernel(%arg0: i32, %arg1: memref<1x16x128xf32, #tpu.memory_space<vmem>>, %arg2: memref<1x16x128xf32, #tpu.memory_space<vmem>>, %arg3: memref<1x20x128xf32, #tpu.memory_space<vmem>>) attributes {dimension_semantics = [#tpu.dimension_semantics<parallel>], iteration_bounds = array<i64: 1>, scalar_prefetch = 0 : i64, scratch_operands = 1 : i64, tpu.core_type = #tpu.core_type<tc>, window_params = [{transform_indices = @transform_0, window_bounds = array<i64: 1, 16, 128>}, {transform_indices = @transform_1, window_bounds = array<i64: 1, 16, 128>}]} {
    %c0 = arith.constant 0 : index
    %c0_0 = arith.constant 0 : index
    %c0_1 = arith.constant 0 : index
    %0 = vector.load %arg1[%c0, %c0_0, %c0_1] : memref<1x16x128xf32, #tpu.memory_space<vmem>>, vector<1x16x128xf32>
    %cst = arith.constant 2.550000e+02 : f32
    %1 = vector.broadcast %cst : f32 to vector<1x16x128xf32>
    %2 = arith.mulf %0, %1 : vector<1x16x128xf32>
    %3 = math.floor %2 : vector<1x16x128xf32>
    %4 = tpu.iota {dimensions = array<i32: 2>} : vector<1x16x128xi32>
    %c16_i32 = arith.constant 16 : i32
    %c0_i32 = arith.constant 0 : i32
    %5 = arith.cmpi eq, %c16_i32, %c0_i32 : i32
    %c1_i32 = arith.constant 1 : i32
    %6 = arith.select %5, %c1_i32, %c16_i32 : i32
    %7 = vector.broadcast %6 : i32 to vector<1x16x128xi32>
    %8 = arith.remsi %4, %7 : vector<1x16x128xi32>
    %c0_i32_2 = arith.constant 0 : i32
    %9 = vector.broadcast %c0_i32_2 : i32 to vector<1x16x128xi32>
    %10 = arith.cmpi ne, %8, %9 : vector<1x16x128xi32>
    %c0_i32_3 = arith.constant 0 : i32
    %11 = vector.broadcast %c0_i32_3 : i32 to vector<1x16x128xi32>
    %12 = arith.cmpi slt, %8, %11 : vector<1x16x128xi32>
    %c0_i32_4 = arith.constant 0 : i32
    %13 = arith.cmpi slt, %6, %c0_i32_4 : i32
    %14 = vector.broadcast %13 : i1 to vector<1x16x128xi1>
    %15 = vector.broadcast %14 : vector<1x16x128xi1> to vector<1x16x128xi1>
    %16 = arith.xori %12, %15 : vector<1x16x128xi1>
    %17 = arith.andi %16, %10 : vector<1x16x128xi1>
    %18 = vector.broadcast %6 : i32 to vector<1x16x128xi32>
    %19 = arith.addi %8, %18 : vector<1x16x128xi32>
    %20 = arith.select %17, %19, %8 : vector<1x16x128xi1>, vector<1x16x128xi32>
    %cst_5 = arith.constant 0.251379132 : f32
    %21 = vector.broadcast %cst_5 : f32 to vector<1x16x128xf32>
    %22 = arith.mulf %21, %3 : vector<1x16x128xf32>
    %c1_i32_6 = arith.constant 1 : i32
    %23 = vector.broadcast %c1_i32_6 : i32 to vector<1x16x128xi32>
    %24 = arith.cmpi slt, %20, %23 : vector<1x16x128xi32>
    %c1_i32_7 = arith.constant 1 : i32
    %25 = tpu.dynamic_rotate %3 by %c1_i32_7 dim 2 : vector<1x16x128xf32>, i32 -> vector<1x16x128xf32>
    %26 = arith.select %24, %3, %25 : vector<1x16x128xi1>, vector<1x16x128xf32>
    %c15_i32 = arith.constant 15 : i32
    %27 = vector.broadcast %c15_i32 : i32 to vector<1x16x128xi32>
    %28 = arith.cmpi sge, %20, %27 : vector<1x16x128xi32>
    %c127_i32 = arith.constant 127 : i32
    %29 = tpu.dynamic_rotate %3 by %c127_i32 dim 2 : vector<1x16x128xf32>, i32 -> vector<1x16x128xf32>
    %30 = arith.select %28, %3, %29 : vector<1x16x128xi1>, vector<1x16x128xf32>
    %31 = arith.addf %26, %30 : vector<1x16x128xf32>
    %cst_8 = arith.constant 0.221841291 : f32
    %32 = vector.broadcast %cst_8 : f32 to vector<1x16x128xf32>
    %33 = arith.mulf %32, %31 : vector<1x16x128xf32>
    %34 = arith.addf %22, %33 : vector<1x16x128xf32>
    %c2_i32 = arith.constant 2 : i32
    %35 = vector.broadcast %c2_i32 : i32 to vector<1x16x128xi32>
    %36 = arith.cmpi slt, %20, %35 : vector<1x16x128xi32>
    %c2_i32_9 = arith.constant 2 : i32
    %37 = tpu.dynamic_rotate %3 by %c2_i32_9 dim 2 : vector<1x16x128xf32>, i32 -> vector<1x16x128xf32>
    %38 = arith.select %36, %26, %37 : vector<1x16x128xi1>, vector<1x16x128xf32>
    %c14_i32 = arith.constant 14 : i32
    %39 = vector.broadcast %c14_i32 : i32 to vector<1x16x128xi32>
    %40 = arith.cmpi sge, %20, %39 : vector<1x16x128xi32>
    %c126_i32 = arith.constant 126 : i32
    %41 = tpu.dynamic_rotate %3 by %c126_i32 dim 2 : vector<1x16x128xf32>, i32 -> vector<1x16x128xf32>
    %42 = arith.select %40, %30, %41 : vector<1x16x128xi1>, vector<1x16x128xf32>
    %43 = arith.addf %38, %42 : vector<1x16x128xf32>
    %cst_10 = arith.constant 0.152469143 : f32
    %44 = vector.broadcast %cst_10 : f32 to vector<1x16x128xf32>
    %45 = arith.mulf %44, %43 : vector<1x16x128xf32>
    %46 = arith.addf %34, %45 : vector<1x16x128xf32>
    %c0_11 = arith.constant 0 : index
    %c2 = arith.constant 2 : index
    %c0_12 = arith.constant 0 : index
    %47 = vector.load %arg3[%c0_11, %c2, %c0_12] : memref<1x20x128xf32, #tpu.memory_space<vmem>>, vector<1x16x128xf32>
    tpu.vector_store %arg3[%c0_11, %c2, %c0_12], %46 {strides = array<i32>} : memref<1x20x128xf32, #tpu.memory_space<vmem>>, vector<1x16x128xf32>,
    %48 = vector.extract_strided_slice %46 {offsets = [0, 0, 0], sizes = [1, 1, 128], strides = [1, 1, 1]} : vector<1x16x128xf32> to vector<1x1x128xf32>
    %c0_13 = arith.constant 0 : index
    %c0_14 = arith.constant 0 : index
    %c0_15 = arith.constant 0 : index
    %49 = vector.load %arg3[%c0_13, %c0_14, %c0_15] : memref<1x20x128xf32, #tpu.memory_space<vmem>>, vector<1x1x128xf32>
    tpu.vector_store %arg3[%c0_13, %c0_14, %c0_15], %48 {strides = array<i32>} : memref<1x20x128xf32, #tpu.memory_space<vmem>>, vector<1x1x128xf32>,
    %50 = vector.extract_strided_slice %46 {offsets = [0, 15, 0], sizes = [1, 1, 128], strides = [1, 1, 1]} : vector<1x16x128xf32> to vector<1x1x128xf32>
    %c0_16 = arith.constant 0 : index
    %c18 = arith.constant 18 : index
    %c0_17 = arith.constant 0 : index
    %51 = vector.load %arg3[%c0_16, %c18, %c0_17] : memref<1x20x128xf32, #tpu.memory_space<vmem>>, vector<1x1x128xf32>
    tpu.vector_store %arg3[%c0_16, %c18, %c0_17], %50 {strides = array<i32>} : memref<1x20x128xf32, #tpu.memory_space<vmem>>, vector<1x1x128xf32>,
    %52 = vector.extract_strided_slice %46 {offsets = [0, 0, 0], sizes = [1, 1, 128], strides = [1, 1, 1]} : vector<1x16x128xf32> to vector<1x1x128xf32>
    %c0_18 = arith.constant 0 : index
    %c1 = arith.constant 1 : index
    %c0_19 = arith.constant 0 : index
    %53 = vector.load %arg3[%c0_18, %c1, %c0_19] : memref<1x20x128xf32, #tpu.memory_space<vmem>>, vector<1x1x128xf32>
    tpu.vector_store %arg3[%c0_18, %c1, %c0_19], %52 {strides = array<i32>} : memref<1x20x128xf32, #tpu.memory_space<vmem>>, vector<1x1x128xf32>,
    %54 = vector.extract_strided_slice %46 {offsets = [0, 15, 0], sizes = [1, 1, 128], strides = [1, 1, 1]} : vector<1x16x128xf32> to vector<1x1x128xf32>
    %c0_20 = arith.constant 0 : index
    %c19 = arith.constant 19 : index
    %c0_21 = arith.constant 0 : index
    %55 = vector.load %arg3[%c0_20, %c19, %c0_21] : memref<1x20x128xf32, #tpu.memory_space<vmem>>, vector<1x1x128xf32>
    tpu.vector_store %arg3[%c0_20, %c19, %c0_21], %54 {strides = array<i32>} : memref<1x20x128xf32, #tpu.memory_space<vmem>>, vector<1x1x128xf32>,
    %cst_22 = arith.constant 0.251379132 : f32
    %56 = vector.broadcast %cst_22 : f32 to vector<1x16x128xf32>
    %57 = arith.mulf %56, %46 : vector<1x16x128xf32>
    %c0_23 = arith.constant 0 : index
    %c1_24 = arith.constant 1 : index
    %c0_25 = arith.constant 0 : index
    %58 = vector.load %arg3[%c0_23, %c1_24, %c0_25] : memref<1x20x128xf32, #tpu.memory_space<vmem>>, vector<1x16x128xf32>
    %c0_26 = arith.constant 0 : index
    %c3 = arith.constant 3 : index
    %c0_27 = arith.constant 0 : index
    %59 = vector.load %arg3[%c0_26, %c3, %c0_27] : memref<1x20x128xf32, #tpu.memory_space<vmem>>, vector<1x16x128xf32>
    %60 = arith.addf %58, %59 : vector<1x16x128xf32>
    %cst_28 = arith.constant 0.221841291 : f32
    %61 = vector.broadcast %cst_28 : f32 to vector<1x16x128xf32>
    %62 = arith.mulf %61, %60 : vector<1x16x128xf32>
    %63 = arith.addf %57, %62 : vector<1x16x128xf32>
    %c0_29 = arith.constant 0 : index
    %c0_30 = arith.constant 0 : index
    %c0_31 = arith.constant 0 : index
    %64 = vector.load %arg3[%c0_29, %c0_30, %c0_31] : memref<1x20x128xf32, #tpu.memory_space<vmem>>, vector<1x16x128xf32>
    %c0_32 = arith.constant 0 : index
    %c4 = arith.constant 4 : index
    %c0_33 = arith.constant 0 : index
    %65 = vector.load %arg3[%c0_32, %c4, %c0_33] : memref<1x20x128xf32, #tpu.memory_space<vmem>>, vector<1x16x128xf32>
    %66 = arith.addf %64, %65 : vector<1x16x128xf32>
    %cst_34 = arith.constant 0.152469143 : f32
    %67 = vector.broadcast %cst_34 : f32 to vector<1x16x128xf32>
    %68 = arith.mulf %67, %66 : vector<1x16x128xf32>
    %69 = arith.addf %63, %68 : vector<1x16x128xf32>
    %cst_35 = arith.constant 5.000000e-01 : f32
    %70 = vector.broadcast %cst_35 : f32 to vector<1x16x128xf32>
    %71 = arith.addf %69, %70 : vector<1x16x128xf32>
    %cst_36 = arith.constant 2.550000e+02 : f32
    %72 = vector.broadcast %cst_36 : f32 to vector<1x16x128xf32>
    %73 = arith.minimumf %71, %72 : vector<1x16x128xf32>
    %74 = math.floor %73 : vector<1x16x128xf32>
    %cst_37 = arith.constant 0.00392156886 : f32
    %75 = vector.broadcast %cst_37 : f32 to vector<1x16x128xf32>
    %76 = arith.mulf %74, %75 : vector<1x16x128xf32>
    %c0_38 = arith.constant 0 : index
    %c0_39 = arith.constant 0 : index
    %c0_40 = arith.constant 0 : index
    %77 = vector.load %arg2[%c0_38, %c0_39, %c0_40] : memref<1x16x128xf32, #tpu.memory_space<vmem>>, vector<1x16x128xf32>
    tpu.vector_store %arg2[%c0_38, %c0_39, %c0_40], %76 {strides = array<i32>} : memref<1x16x128xf32, #tpu.memory_space<vmem>>, vector<1x16x128xf32>,
    return
  }
  func.func @transform_0(%arg0: i32) -> (i32, i32, i32) {
    %c0_i32 = arith.constant 0 : i32
    %c0_i32_0 = arith.constant 0 : i32
    %c0_i32_1 = arith.constant 0 : i32
    return %arg0, %c0_i32, %c0_i32_0 : i32, i32, i32
  }
  func.func @transform_1(%arg0: i32) -> (i32, i32, i32) {
    %c0_i32 = arith.constant 0 : i32
    %c0_i32_0 = arith.constant 0 : i32
    %c0_i32_1 = arith.constant 0 : i32
    return %arg0, %c0_i32, %c0_i32_0 : i32, i32, i32
  }
}

</mosaic_0001>

<llo_original>
// kernel: tpu_custom_call.1
$region0: #{tpu_custom_call.1}
  #allocation0 [shape = 'u32[]', space=smem, size = 0x4, offset = 0x4, fixed_abs, tag = 'smem constant byte address 0x4 - core index']
  #allocation1 [shape = 'u32[144,128]{1,0:T(1,128)}', space=vmem, size = 0x12000, scoped, tag = 'internal scratch']
  #allocation2 [shape = 'f32[1,20,128]{2,1,0:T(8,128)}', space=vmem, size = 0x3000, scoped, tag = 'scratch operand']
  %s0 = inlined_call_operand.hbm [shape: f32[1,16,128], index: 0, kind: input, shape index: {}]
  %s1 = inlined_call_operand.hbm [shape: f32[1,16,128], index: 1, kind: output, shape index: {}]
  %s2 = sld [smem:[#allocation0]]
  $region18: #{tpu_custom_call.1} parent=0
    _
  %s4 = ssub.s32 1, %s2
  %s5 = scalar_select 0, %s4, %s2
  $region1: #{tpu_custom_call.1} parent=0
    #allocation3 [shape = 'u8[8192]{0}', space=vmem, size = 0x2000, scoped, tag = 'input window, operand 0, single buffered']
    #allocation4 [shape = 's32[1]{0}', space=sflag, size = 0x4, scoped, tag = 'scoped memory for tpu_custom_call.1']
    #allocation5 [shape = 's32[1]{0}', space=sflag, size = 0x4, scoped, tag = 'scoped memory for tpu_custom_call.1']
    #allocation6 [shape = 'u8[8192]{0}', space=vmem, size = 0x2000, scoped, tag = 'output window, operand 0, single buffered']
    %6 = vsyncpa [#allocation4], 0
    %7 = vsyncpa [#allocation5], 0
    // Predicated region
    $region2: #{tpu_custom_call.1} parent=1 // pred_check
      _
    $region3: #{tpu_custom_call.1} parent=1 // pred_check_branch
      %9 = sbr.rel (0) target = $region5
    $region4: #{tpu_custom_call.1} parent=1 // pred_region
      %s11 = ssub.s32 256, 256
      %12 = vsyncadd [#allocation4], %s11
      %s13 = sshll.u32 [#allocation3], 4
      %s14 = int_to_ptr.vmem [resolvable:$true] %s13
      %19 = dma.hbm_to_vmem [thread:$0]  %s0, 256, %s14, [#allocation4], 128, 128, 8
    $region5: #{tpu_custom_call.1} parent=1 // pred_fallthru
      _
    // Predicated region
    $region6: #{tpu_custom_call.1} parent=1 // pred_check
      _
    $region7: #{tpu_custom_call.1} parent=1 // pred_check_branch
      %21 = sbr.rel (0) target = $region9
    $region8: #{tpu_custom_call.1} parent=1 // pred_region
      %22 = dma.done [#allocation4], 256
    $region9: #{tpu_custom_call.1} parent=1 // pred_fallthru
      _
    %v23 = vld [vmem:[#allocation3] sm:$0xff]
    %v24 = vld [vmem:[#allocation3 + $0x8] sm:$0xff]
    %v25 = vmul.f32 %v23, 255.0
    %v26 = vmul.f32 %v24, 255.0
    %v27 = vfloor.f32 %v25
    %v28 = vfloor.f32 %v26
    %v29 = vlaneseq
    %v30 = vand.u32 %v29, 127
    %vm31 = vcmp.lt.s32.totalorder %v30, 0
    %v32 = vsub.s32 0, %v30
    %v33 = vsel %vm31, %v32, %v30
    %v34 = vshrl.u32 %v33, 4
    %v35 = vand.u32 %v33, 15
    %v36 = vsub.s32 0, %v35
    %v37 = vsel %vm31, %v36, %v35
    %vm38 = vcmp.ne.s32.totalorder %v37, 0
    %vm39 = vcmp.lt.s32.totalorder %v37, 0
    %vm40 = vmand %vm39, %vm38
    %v41 = vadd.s32 %v37, 16
    %v42 = vsel %vm40, %v41, %v37
    %v43 = vmul.f32 %v27, 0.25137913
    %v44 = vmul.f32 %v28, 0.25137913
    %vm45 = vcmp.lt.s32.totalorder %v42, 1
    %46 = vrot.lane.b32.xlu0 %v27, 1
    %v47 = vpop.permute.xlu0 %46
    %48 = vrot.lane.b32.xlu0 %v28, 1
    %v49 = vpop.permute.xlu0 %48
    %v50 = vsel %vm45, %v27, %v47
    %v51 = vsel %vm45, %v28, %v49
    %vm52 = vcmp.ge.s32.totalorder %v42, 15
    %53 = vrot.lane.b32.xlu0 %v27, 127
    %v54 = vpop.permute.xlu0 %53
    %55 = vrot.lane.b32.xlu0 %v28, 127
    %v56 = vpop.permute.xlu0 %55
    %v57 = vsel %vm52, %v27, %v54
    %v58 = vsel %vm52, %v28, %v56
    %v59 = vadd.f32 %v50, %v57
    %v60 = vadd.f32 %v51, %v58
    %v61 = vmul.f32 %v59, 0.22184129
    %v62 = vmul.f32 %v60, 0.22184129
    %v63 = vadd.f32 %v43, %v61
    %v64 = vadd.f32 %v44, %v62
    %vm65 = vcmp.lt.s32.totalorder %v42, 2
    %66 = vrot.lane.b32.xlu0 %v27, 2
    %v67 = vpop.permute.xlu0 %66
    %68 = vrot.lane.b32.xlu0 %v28, 2
    %v69 = vpop.permute.xlu0 %68
    %v70 = vsel %vm65, %v50, %v67
    %v71 = vsel %vm65, %v51, %v69
    %vm72 = vcmp.ge.s32.totalorder %v42, 14
    %73 = vrot.lane.b32.xlu0 %v27, 126
    %v74 = vpop.permute.xlu0 %73
    %75 = vrot.lane.b32.xlu0 %v28, 126
    %v76 = vpop.permute.xlu0 %75
    %v77 = vsel %vm72, %v57, %v74
    %v78 = vsel %vm72, %v58, %v76
    %v79 = vadd.f32 %v70, %v77
    %v80 = vadd.f32 %v71, %v78
    %v81 = vmul.f32 %v79, 0.15246914
    %v82 = vmul.f32 %v80, 0.15246914
    %v83 = vadd.f32 %v63, %v81
    %v84 = vadd.f32 %v64, %v82
    %85 = vst [vmem:[#allocation2 + $0x2] sm:$0xff] %v83
    %86 = vst [vmem:[#allocation2 + $0xa] sm:$0xff] %v84
    %87 = vst [vmem:[#allocation2] sm:$0x1] %v83
    %88 = vst [vmem:[#allocation2 + $0xb] sm:$0x80] %v84
    %89 = vst [vmem:[#allocation2 + $0x1] sm:$0x1] %v83
    %90 = vst [vmem:[#allocation2 + $0xc] sm:$0x80] %v84
    %v91 = vmul.f32 %v83, 0.25137913
    %v92 = vmul.f32 %v84, 0.25137913
    %v93 = vld [vmem:[#allocation2 + $0x1] sm:$0xff]
    %v94 = vld [vmem:[#allocation2 + $0x9] sm:$0xff]
    %v95 = vld [vmem:[#allocation2 + $0x3] sm:$0xff]
    %v96 = vld [vmem:[#allocation2 + $0xb] sm:$0xff]
    %v97 = vadd.f32 %v93, %v95
    %v98 = vadd.f32 %v94, %v96
    %v99 = vmul.f32 %v97, 0.22184129
    %v100 = vmul.f32 %v98, 0.22184129
    %v101 = vadd.f32 %v91, %v99
    %v102 = vadd.f32 %v92, %v100
    %v103 = vld [vmem:[#allocation2] sm:$0xff]
    %v104 = vld [vmem:[#allocation2 + $0x8] sm:$0xff]
    %v105 = vld [vmem:[#allocation2 + $0x4] sm:$0xff]
    %v106 = vld [vmem:[#allocation2 + $0xc] sm:$0xff]
    %v107 = vadd.f32 %v103, %v105
    %v108 = vadd.f32 %v104, %v106
    %v109 = vmul.f32 %v107, 0.15246914
    %v110 = vmul.f32 %v108, 0.15246914
    %v111 = vadd.f32 %v101, %v109
    %v112 = vadd.f32 %v102, %v110
    %v113 = vadd.f32 %v111, 0.5
    %v114 = vadd.f32 %v112, 0.5
    %v115 = vmin.f32 %v113, 255.0
    %v116 = vmin.f32 %v114, 255.0
    %v117 = vfloor.f32 %v115
    %v118 = vfloor.f32 %v116
    %v119 = vmul.f32 %v117, 0.003921569
    %v120 = vmul.f32 %v118, 0.003921569
    %121 = vst [vmem:[#allocation6] sm:$0xff] %v119
    %122 = vst [vmem:[#allocation6 + $0x8] sm:$0xff] %v120
    // Predicated region
    $region10: #{tpu_custom_call.1} parent=1 // pred_check
      _
    $region11: #{tpu_custom_call.1} parent=1 // pred_check_branch
      %124 = sbr.rel (0) target = $region13
    $region12: #{tpu_custom_call.1} parent=1 // pred_region
      %s126 = ssub.s32 256, 256
      %127 = vsyncadd [#allocation5], %s126
      %s128 = sshll.u32 [#allocation6], 4
      %s129 = int_to_ptr.vmem [resolvable:$true] %s128
      %134 = dma.vmem_to_hbm [thread:$0]  %s129, 256, %s1, [#allocation5], 128, 128, 8
    $region13: #{tpu_custom_call.1} parent=1 // pred_fallthru
      _
    // Predicated region
    $region14: #{tpu_custom_call.1} parent=1 // pred_check
      _
    $region15: #{tpu_custom_call.1} parent=1 // pred_check_branch
      %136 = sbr.rel (0) target = $region17
    $region16: #{tpu_custom_call.1} parent=1 // pred_region
      %137 = dma.done [#allocation5], 256
    $region17: #{tpu_custom_call.1} parent=1 // pred_fallthru
      _
    %138 = vsyncpa [#allocation4], 1
    %139 = vsyncpa [#allocation5], 1

</llo_original>
